<compile_context>
chip_gen: v5e
topology: v5e:2x2
jax: 0.10.0
libtpu: 0.0.40
codegen_flags: <defaults>
</compile_context>

<pallas_src>
import functools

import jax
import jax.numpy as jnp
from jax import lax
from jax.experimental import pallas as pl
from jax.experimental.pallas import tpu as pltpu

EPS = 1e-4


def _gem_pool_kernel(p_ref, x_ref, o_ref, acc_ref, *, t_total, t_tile):
    # p_ref:   SMEM (1,) f32        -- learnable exponent p
    # x_ref:   VMEM (tR, tT) tile   -- rows x T-chunk of the flattened input
    # o_ref:   VMEM (tR, 1) tile    -- pooled output per row
    # acc_ref: VMEM (tR, 1) f32     -- running sum of clamp(x, eps) ** p over T
    k = pl.program_id(1)
    nk = pl.num_programs(1)
    p = p_ref[0]

    @pl.when(k == 0)
    def _init():
        acc_ref[...] = jnp.zeros_like(acc_ref)

    x = x_ref[...].astype(jnp.float32)
    x = jnp.maximum(x, EPS)                       # clamp(min=eps)      (VPU)
    xp = jnp.exp(p * jnp.log(x))                  # x ** p  (x > 0)     (EUP)

    if t_total % t_tile != 0:
        # Ragged trailing T-chunk: zero padded lanes so they add 0 to the sum.
        t_idx = k * t_tile + lax.broadcasted_iota(jnp.int32, xp.shape, 1)
        xp = jnp.where(t_idx < t_total, xp, 0.0)

    acc_ref[...] += jnp.sum(xp, axis=-1, keepdims=True)   # lane reduce  (XLU)

    @pl.when(k == nk - 1)
    def _finalize():
        m = acc_ref[...] * (1.0 / t_total)        # mean over the true T
        o_ref[...] = jnp.exp((1.0 / p) * jnp.log(m)).astype(o_ref.dtype)


def _default_row_tile(rows: int) -> int:
    # Block rows must be a multiple of 8 or the full extent.
    if rows % 8 == 0:
        return min(rows, 512)
    return rows                                   # full extent (small/odd counts)


def _default_t_tile(t: int) -> int:
    # Block T must be a multiple of 128 or the full extent.
    if t % 128 == 0:
        return min(t, 2048)
    if t <= 4096:
        return t                                  # full extent, no masking needed
    return 2048                                   # ragged trailing chunk is masked


def gem_pool_1d(x: jax.Array, p: jax.Array, *, row_tile=None, t_tile=None) -> jax.Array:
    """GeM pooling. x: (B, C, T) -> (B, C, 1). p: (1,) learnable exponent."""
    B, C, T = x.shape
    rows = B * C
    x2 = x.reshape(rows, T)                       # free, contiguous reshape
    p = p.astype(jnp.float32).reshape((1,))

    tR = _default_row_tile(rows) if row_tile is None else row_tile
    tT = _default_t_tile(T) if t_tile is None else t_tile
    assert tR == rows or tR % 8 == 0
    assert tT == T or tT % 128 == 0

    grid = (pl.cdiv(rows, tR), pl.cdiv(T, tT))    # reduction (T) axis last

    in_bytes = rows * T * x.dtype.itemsize
    out_bytes = rows * x.dtype.itemsize
    cost = pl.CostEstimate(
        flops=3 * rows * T,
        transcendentals=2 * rows * T + 2 * rows,  # log+exp per element (+finalize)
        bytes_accessed=in_bytes + out_bytes + 4,
    )

    out = pl.pallas_call(
        functools.partial(_gem_pool_kernel, t_total=T, t_tile=tT),
        out_shape=jax.ShapeDtypeStruct((rows, 1), x.dtype),
        grid=grid,
        in_specs=[
            pl.BlockSpec(memory_space=pltpu.MemorySpace.SMEM),   # p (scalar)
            pl.BlockSpec((tR, tT), lambda i, k: (i, k)),         # x row/T tile
        ],
        out_specs=pl.BlockSpec((tR, 1), lambda i, k: (i, 0)),
        scratch_shapes=[pltpu.VMEM((tR, 1), jnp.float32)],
        compiler_params=pltpu.CompilerParams(
            dimension_semantics=("parallel", "arbitrary"),
            vmem_limit_bytes=32 * 1024 * 1024,    # safe on v7x (64 MiB physical)
        ),
        cost_estimate=cost,
    )(p, x2)

    return out.reshape(B, C, 1)


def gem_pool_1d_ref(x: jax.Array, p: jax.Array) -> jax.Array:
    """Pure-JAX reference mirroring the PyTorch forward."""
    pv = jnp.asarray(p, jnp.float32).reshape(())
    xc = jnp.maximum(x.astype(jnp.float32), EPS)           # clamp(min=eps)
    m = jnp.mean(xc ** pv, axis=-1, keepdims=True)         # adaptive_avg_pool1d(.,1)
    return (m ** (1.0 / pv)).astype(x.dtype)


if __name__ == "__main__":
    key = jax.random.PRNGKey(0)
    k1, k2 = jax.random.split(key)
    p_param = jnp.ones((1,), dtype=jnp.float32) * 3.0      # nn.Parameter(ones(1)*3)

    # Case 1: tiny shape matching the module's (b, c, t) layout.
    B, C, T = 2, 4, 16
    x = jax.random.normal(k1, (B, C, T), dtype=jnp.float32)
    out = jax.block_until_ready(gem_pool_1d(x, p_param))
    ref = gem_pool_1d_ref(x, p_param)
    assert out.shape == (B, C, 1)
    assert jnp.allclose(out, ref, rtol=1e-4, atol=1e-6), (out, ref)

    # Case 2: multi-chunk T reduction (exact and ragged chunks) to exercise the
    # accumulator and lane-masking paths.
    B2, C2, T2 = 2, 8, 384
    x2 = jax.random.normal(k2, (B2, C2, T2), dtype=jnp.float32)
    ref2 = gem_pool_1d_ref(x2, p_param)
    out2a = jax.block_until_ready(gem_pool_1d(x2, p_param, t_tile=128))  # 3 exact chunks
    out2b = jax.block_until_ready(gem_pool_1d(x2, p_param, t_tile=256))  # ragged last chunk
    assert jnp.allclose(out2a, ref2, rtol=1e-4, atol=1e-6)
    assert jnp.allclose(out2b, ref2, rtol=1e-4, atol=1e-6)

    # Case 3: bf16 input stays bf16 in HBM; kernel upcasts to f32 internally.
    xb = x.astype(jnp.bfloat16)
    outb = jax.block_until_ready(gem_pool_1d(xb, p_param))
    refb = gem_pool_1d_ref(xb, p_param)
    assert outb.dtype == jnp.bfloat16 and outb.shape == (B, C, 1)
    assert jnp.allclose(outb.astype(jnp.float32), refb.astype(jnp.float32),
                        rtol=5e-2, atol=1e-2)

    print("KERNEL_OK")
</pallas_src>

<mosaic_0001>
module attributes {stable_mosaic.version = 11 : i64} {
  func.func @_gem_pool_kernel(%arg0: i32, %arg1: i32, %arg2: memref<1xf32, #tpu.memory_space<smem>>, %arg3: memref<8x16xf32, #tpu.memory_space<vmem>>, %arg4: memref<8x1xf32, #tpu.memory_space<vmem>>, %arg5: memref<8x1xf32, #tpu.memory_space<vmem>>) attributes {dimension_semantics = [#tpu.dimension_semantics<parallel>, #tpu.dimension_semantics<arbitrary>], iteration_bounds = array<i64: 1, 1>, scalar_prefetch = 0 : i64, scratch_operands = 1 : i64, tpu.core_type = #tpu.core_type<tc>, window_params = [{transform_indices = @transform_0, window_bounds = array<i64: 1>}, {transform_indices = @transform_1, window_bounds = array<i64: 8, 16>}, {transform_indices = @transform_2, window_bounds = array<i64: 8, 1>}]} {
    %c0 = arith.constant 0 : index
    %0 = memref.load %arg2[%c0] : memref<1xf32, #tpu.memory_space<smem>>
    %c0_i32 = arith.constant 0 : i32
    %1 = arith.cmpi eq, %arg1, %c0_i32 : i32
    %2 = arith.extui %1 : i1 to i32
    %c0_i32_0 = arith.constant 0 : i32
    %3 = arith.cmpi ne, %2, %c0_i32_0 : i32
    scf.if %3 {
      %cst_10 = arith.constant 0.000000e+00 : f32
      %19 = vector.broadcast %cst_10 : f32 to vector<8x1xf32>
      %c0_11 = arith.constant 0 : index
      %c0_12 = arith.constant 0 : index
      %20 = vector.load %arg5[%c0_11, %c0_12] : memref<8x1xf32, #tpu.memory_space<vmem>>, vector<8x1xf32>
      tpu.vector_store %arg5[%c0_11, %c0_12], %19 {strides = array<i32>} : memref<8x1xf32, #tpu.memory_space<vmem>>, vector<8x1xf32>,
    } else {
    }
    %c0_1 = arith.constant 0 : index
    %c0_2 = arith.constant 0 : index
    %4 = vector.load %arg3[%c0_1, %c0_2] : memref<8x16xf32, #tpu.memory_space<vmem>>, vector<8x16xf32>
    %cst = arith.constant 9.99999974E-5 : f32
    %5 = vector.broadcast %cst : f32 to vector<8x16xf32>
    %6 = arith.maximumf %4, %5 : vector<8x16xf32>
    %7 = math.log %6 : vector<8x16xf32>
    %8 = vector.broadcast %0 : f32 to vector<8x16xf32>
    %9 = arith.mulf %8, %7 : vector<8x16xf32>
    %10 = math.exp %9 : vector<8x16xf32>
    %c0_3 = arith.constant 0 : index
    %c0_4 = arith.constant 0 : index
    %11 = vector.load %arg5[%c0_3, %c0_4] : memref<8x1xf32, #tpu.memory_space<vmem>>, vector<8x1xf32>
    %cst_5 = arith.constant dense<0.000000e+00> : vector<8xf32>
    %12 = vector.multi_reduction <add>, %10, %cst_5 [1] : vector<8x16xf32> to vector<8xf32>
    %13 = vector.shape_cast %12 : vector<8xf32> to vector<8x1xf32>
    %14 = arith.addf %11, %13 : vector<8x1xf32>
    %c0_6 = arith.constant 0 : index
    %c0_7 = arith.constant 0 : index
    %15 = vector.load %arg5[%c0_6, %c0_7] : memref<8x1xf32, #tpu.memory_space<vmem>>, vector<8x1xf32>
    tpu.vector_store %arg5[%c0_6, %c0_7], %14 {strides = array<i32>} : memref<8x1xf32, #tpu.memory_space<vmem>>, vector<8x1xf32>,
    %c0_i32_8 = arith.constant 0 : i32
    %16 = arith.cmpi eq, %arg1, %c0_i32_8 : i32
    %17 = arith.extui %16 : i1 to i32
    %c0_i32_9 = arith.constant 0 : i32
    %18 = arith.cmpi ne, %17, %c0_i32_9 : i32
    scf.if %18 {
      %c0_10 = arith.constant 0 : index
      %c0_11 = arith.constant 0 : index
      %19 = vector.load %arg5[%c0_10, %c0_11] : memref<8x1xf32, #tpu.memory_space<vmem>>, vector<8x1xf32>
      %cst_12 = arith.constant 6.250000e-02 : f32
      %20 = vector.broadcast %cst_12 : f32 to vector<8x1xf32>
      %21 = arith.mulf %19, %20 : vector<8x1xf32>
      %cst_13 = arith.constant 1.000000e+00 : f32
      %22 = arith.divf %cst_13, %0 : f32
      %23 = math.log %21 : vector<8x1xf32>
      %24 = vector.broadcast %22 : f32 to vector<8x1xf32>
      %25 = arith.mulf %24, %23 : vector<8x1xf32>
      %26 = math.exp %25 : vector<8x1xf32>
      %c0_14 = arith.constant 0 : index
      %c0_15 = arith.constant 0 : index
      %27 = vector.load %arg4[%c0_14, %c0_15] : memref<8x1xf32, #tpu.memory_space<vmem>>, vector<8x1xf32>
      tpu.vector_store %arg4[%c0_14, %c0_15], %26 {strides = array<i32>} : memref<8x1xf32, #tpu.memory_space<vmem>>, vector<8x1xf32>,
    } else {
    }
    return
  }
  func.func @transform_0(%arg0: i32, %arg1: i32) -> i32 {
    %c0_i32 = arith.constant 0 : i32
    %c0_i32_0 = arith.constant 0 : i32
    return %c0_i32 : i32
  }
  func.func @transform_1(%arg0: i32, %arg1: i32) -> (i32, i32) {
    %c0_i32 = arith.constant 0 : i32
    return %arg0, %arg1 : i32, i32
  }
  func.func @transform_2(%arg0: i32, %arg1: i32) -> (i32, i32) {
    %c0_i32 = arith.constant 0 : i32
    %c0_i32_0 = arith.constant 0 : i32
    return %arg0, %c0_i32 : i32, i32
  }
}

</mosaic_0001>

<llo_original>
// kernel: tpu_custom_call.1
$region0: #{tpu_custom_call.1}
  #allocation0 [shape = 'u32[]', space=smem, size = 0x4, offset = 0x4, fixed_abs, tag = 'smem constant byte address 0x4 - core index']
  #allocation1 [shape = 'u32[72,128]{1,0:T(1,128)}', space=vmem, size = 0x9000, scoped, tag = 'internal scratch']
  #allocation2 [shape = 'f32[8,1]{1,0:T(8,128)}', space=vmem, size = 0x1000, scoped, tag = 'scratch operand']
  #allocation3 [shape = 'f32[1]{0:T(128)S(6)}', space=smem, size = 0x200, scoped, tag = 'scoped memory for tpu_custom_call.1']
  %s0 = inlined_call_operand.<no memory space> [shape: f32[1], index: 0, kind: input, shape index: {}]
  %s1 = inlined_call_operand.hbm [shape: f32[8,16], index: 1, kind: input, shape index: {}]
  %s2 = inlined_call_operand.vmem [shape: f32[8,1], index: 2, kind: output, shape index: {}]
  %s3 = sld [smem:[#allocation0]]
  $region30: #{tpu_custom_call.1} parent=0
    _
  %s5 = ssub.s32 1, %s3
  %s6 = scalar_select 0, %s5, %s3
  %7 = sst [smem:[#allocation3]] %s0
  $region1: #{tpu_custom_call.1} parent=0
    #allocation4 [shape = 'u8[4096]{0}', space=vmem, size = 0x1000, scoped, tag = 'input window, operand 1, single buffered']
    #allocation5 [shape = 's32[1]{0}', space=sflag, size = 0x4, scoped, tag = 'scoped memory for tpu_custom_call.1']
    %8 = vsyncpa [#allocation5], 0
    // Predicated region
    $region2: #{tpu_custom_call.1} parent=1 // pred_check
      _
    $region3: #{tpu_custom_call.1} parent=1 // pred_check_branch
      %10 = sbr.rel (0) target = $region5
    $region4: #{tpu_custom_call.1} parent=1 // pred_region
      _
    $region5: #{tpu_custom_call.1} parent=1 // pred_fallthru
      _
    // Predicated region
    $region6: #{tpu_custom_call.1} parent=1 // pred_check
      _
    $region7: #{tpu_custom_call.1} parent=1 // pred_check_branch
      %12 = sbr.rel (0) target = $region9
    $region8: #{tpu_custom_call.1} parent=1 // pred_region
      %14 = vsyncadd [#allocation5], 0
      %s16 = sshll.u32 %s1, 4
      %s17 = int_to_ptr.hbm [resolvable:$true] %s16
      %s18 = sshll.u32 [#allocation4], 4
      %s19 = int_to_ptr.vmem [resolvable:$true] %s18
      %21 = dma.hbm_to_vmem [thread:$0]  %s17, 128, %s19, [#allocation5]
    $region9: #{tpu_custom_call.1} parent=1 // pred_fallthru
      _
    // Predicated region
    $region10: #{tpu_custom_call.1} parent=1 // pred_check
      _
    $region11: #{tpu_custom_call.1} parent=1 // pred_check_branch
      %23 = sbr.rel (0) target = $region13
    $region12: #{tpu_custom_call.1} parent=1 // pred_region
      %25 = dma.done [#allocation5], 128
    $region13: #{tpu_custom_call.1} parent=1 // pred_fallthru
      _
    %s26 = sld [smem:[#allocation3]]
    %p27 = scmp.eq.s32.totalorder 0, 0
    // Predicated region
    $region14: #{tpu_custom_call.1} parent=1 // pred_check
      %p28 = pneg %p27
    $region15: #{tpu_custom_call.1} parent=1 // pred_check_branch
      %30 = sbr.rel (%p28) target = $region17
    $region16: #{tpu_custom_call.1} parent=1 // pred_region
      %vm31 = vcmask 7168
      %32 = vst.msk [vmem:[#allocation2] sm:$0xff] %vm31, 0.0
    $region17: #{tpu_custom_call.1} parent=1 // pred_fallthru
      _
    %v33 = vld [vmem:[#allocation4] sm:$0xff]
    %v34 = vmax.f32 %v33, 0.0001
    %v35 = vlog2.pop %v34
    %v36 = vmul.f32 %v35, 0.6931472
    %v37 = vstv %s26
    %v38 = vmul.f32 %v37, %v36
    %v39 = vmul.f32 %v38, 1.442695
    %v40 = vpow.pop %v39
    %v41 = vld [vmem:[#allocation2] sm:$0xff]
    %vm42 = vcmask 130048
    %v43 = vsel %vm42, %v40, 0.0
    %44 = vadd.xlane.f32.xlu0 %v43
    %v45 = vpop.xlane.xlu0 %44
    %v46 = vadd.f32 %v41, %v45
    %vm47 = vcmask 7168
    %48 = vst.msk [vmem:[#allocation2] sm:$0xff] %vm47, %v46
    // Predicated region
    $region18: #{tpu_custom_call.1} parent=1 // pred_check
      %p49 = pneg %p27
    $region19: #{tpu_custom_call.1} parent=1 // pred_check_branch
      %51 = sbr.rel (%p49) target = $region21
    $region20: #{tpu_custom_call.1} parent=1 // pred_region
      %v52 = vld [vmem:[#allocation2] sm:$0xff]
      %v53 = vmul.f32 %v52, 0.0625
      %v54 = vstv %s26
      %v55 = vrcp.pop %v54
      %v56 = vmul.f32 %v54, %v55
      %v57 = vsub.f32 1.0, %v56
      %v58 = vmul.f32 %v55, %v57
      %v59 = vadd.f32 %v55, %v58
      %vm60 = vweird.f32 %v54
      %vm61 = vweird.f32 %v55
      %vm62 = vmor %vm60, %vm61
      %v63 = vsel %vm62, %v55, %v59
      %v64 = vand.u32 2147483647, %v54
      %vm65 = vcmp.eq.f32.partialorder %v64, 8.507059e+37
      %v66 = vand.u32 %v54, 2147483648
      %v67 = vor.u32 1.1754944e-38, %v66
      %v68 = vsel %vm65, %v67, %v63
      %s69 = vtos %v68
      %v70 = vlog2.pop %v53
      %v71 = vmul.f32 %v70, 0.6931472
      %v72 = vstv %s69
      %v73 = vmul.f32 %v72, %v71
      %v74 = vmul.f32 %v73, 1.442695
      %v75 = vpow.pop %v74
      %76 = vst.msk [vmem:[%s2] sm:$0xff] %vm47, %v75
    $region21: #{tpu_custom_call.1} parent=1 // pred_fallthru
      _
    // Predicated region
    $region22: #{tpu_custom_call.1} parent=1 // pred_check
      _
    $region23: #{tpu_custom_call.1} parent=1 // pred_check_branch
      %78 = sbr.rel (0) target = $region25
    $region24: #{tpu_custom_call.1} parent=1 // pred_region
      _
    $region25: #{tpu_custom_call.1} parent=1 // pred_fallthru
      _
    // Predicated region
    $region26: #{tpu_custom_call.1} parent=1 // pred_check
      _
    $region27: #{tpu_custom_call.1} parent=1 // pred_check_branch
      %80 = sbr.rel (0) target = $region29
    $region28: #{tpu_custom_call.1} parent=1 // pred_region
      _
    $region29: #{tpu_custom_call.1} parent=1 // pred_fallthru
      _
    %81 = vsyncpa [#allocation5], 1

</llo_original>
